<compile_context>
chip_gen: v7x
topology: tpu7x:2x2x1
jax: 0.10.0
libtpu: 0.0.40
codegen_flags: <defaults>
</compile_context>

<pallas_src>
import jax
import jax.numpy as jnp
import numpy as np
from jax.experimental import pallas as pl
from jax.experimental.pallas import tpu as pltpu

_LANE = 128


def _round_up(n, m):
    return (n + m - 1) // m * m


def _tensorcores_per_chip():
    """Best-effort query; fall back to 1 (correct/safe for v5e/v6e)."""
    try:
        info = pltpu.get_tpu_info()
        for attr in ("tensorcores_per_chip", "num_tensorcores", "num_cores",
                     "cores_per_chip"):
            n = getattr(info, attr, None)
            if n:
                return int(n)
    except Exception:
        pass
    return 1


_TC_PER_CHIP = _tensorcores_per_chip()


def lff_kernel(x_ref, b_ref, w_sin_ref, w_cos_ref, w_x_ref, bias_ref, o_ref):
    x = x_ref[...]                                                      # (tb, D)
    # 2*pi is already folded into B.
    proj = jnp.dot(x, b_ref[...], preferred_element_type=jnp.float32)   # (tb, F)
    out = (jnp.dot(jnp.sin(proj), w_sin_ref[...],
                   preferred_element_type=jnp.float32)
           + jnp.dot(jnp.cos(proj), w_cos_ref[...],
                     preferred_element_type=jnp.float32)
           + jnp.dot(x, w_x_ref[...], preferred_element_type=jnp.float32)
           + bias_ref[...])                                             # (tb, Ep)
    o_ref[...] = out.astype(o_ref.dtype)


def prepare_lff_params(B, W, bias):
    """One-time parameter transform (call at init, NOT per forward).

    B:    (D, F)        torch nn.Parameter
    W:    (E, 2F + D)   torch nn.Linear weight
    bias: (E,)          torch nn.Linear bias
    """
    D, F = B.shape
    E = W.shape[0]
    assert W.shape[1] == 2 * F + D
    E_pad = _round_up(E, _LANE)

    B2pi = B * (2.0 * jnp.pi)                      # fold 2*pi into B
    Wt = W.T                                       # (2F + D, E)
    W_sin = Wt[:F]                                 # (F, E)
    W_cos = Wt[F:2 * F]                            # (F, E)
    W_x = Wt[2 * F:]                               # (D, E)

    # Zero-pad the embedding dim to a lane-dense width (exact zeros -> no
    # numerical change; extra columns are sliced off after the kernel).
    pad = E_pad - E
    W_sin = jnp.pad(W_sin, ((0, 0), (0, pad)))
    W_cos = jnp.pad(W_cos, ((0, 0), (0, pad)))
    W_x = jnp.pad(W_x, ((0, 0), (0, pad)))
    bias2d = jnp.pad(bias.reshape(1, E), ((0, 0), (0, pad)))

    return dict(B2pi=B2pi, W_sin=W_sin, W_cos=W_cos, W_x=W_x, bias2d=bias2d,
                D=D, F=F, E=E, E_pad=E_pad)


def lff_forward(x, params, *, max_tile_b=1024):
    """x: (..., D).  `params` from prepare_lff_params."""
    D = params["D"]
    F = params["F"]
    E = params["E"]
    E_pad = params["E_pad"]
    assert x.shape[-1] == D

    lead = x.shape[:-1]
    x2 = x.reshape(-1, D)
    batch = x2.shape[0]

    # --- batch tile selection (review item 2/3/4/5):
    #   * pick the number of steps needed for max_tile_b, then size the tile
    #     to fit the batch with minimal tail padding;
    #   * only split a single large step in two on multi-TC chips (v7x), and
    #     never below 256 rows per step.
    b8 = _round_up(batch, 8)
    steps = -(-b8 // max_tile_b)
    tb = _round_up(-(-b8 // steps), 8)
    if _TC_PER_CHIP >= 2 and steps == 1 and tb >= 512:
        steps = 2
        tb = _round_up(-(-b8 // steps), 8)
    batch_padded = steps * tb

    x_p = x2 if batch_padded == batch else jnp.pad(
        x2, ((0, batch_padded - batch), (0, 0)))

    # VMEM headroom only matters if tiles are pushed very large (review item 7).
    if tb > 2048:
        compiler_params = pltpu.CompilerParams(
            dimension_semantics=("parallel",),
            vmem_limit_bytes=64 * 1024 * 1024)
    else:
        compiler_params = pltpu.CompilerParams(
            dimension_semantics=("parallel",))

    out = pl.pallas_call(
        lff_kernel,
        out_shape=jax.ShapeDtypeStruct((batch_padded, E_pad), x.dtype),
        grid_spec=pltpu.PrefetchScalarGridSpec(
            num_scalar_prefetch=0,
            grid=(steps,),
            in_specs=[
                pl.BlockSpec((tb, D), lambda i: (i, 0)),        # x tile
                pl.BlockSpec((D, F), lambda i: (0, 0)),         # B * 2pi
                pl.BlockSpec((F, E_pad), lambda i: (0, 0)),     # W_sin
                pl.BlockSpec((F, E_pad), lambda i: (0, 0)),     # W_cos
                pl.BlockSpec((D, E_pad), lambda i: (0, 0)),     # W_x
                pl.BlockSpec((1, E_pad), lambda i: (0, 0)),     # bias
            ],
            out_specs=pl.BlockSpec((tb, E_pad), lambda i: (i, 0)),
        ),
        compiler_params=compiler_params,
    )(x_p, params["B2pi"], params["W_sin"], params["W_cos"],
      params["W_x"], params["bias2d"])

    # Slice away batch padding and the zero-padded embedding columns.
    return out[:batch, :E].reshape(*lead, E)


def lff_reference(x, B, W, bias):
    proj = jnp.matmul(x, B) * (2.0 * jnp.pi)
    ff = jnp.concatenate([jnp.sin(proj), jnp.cos(proj), x], axis=-1)
    return jnp.matmul(ff, W.T) + bias


if __name__ == "__main__":
    # Module hyperparameters (consistent with LFF.__init__ defaults).
    input_size = 12
    fourier_dim = 256
    embed_dim = 72
    sigma = 0.01
    batch = 16

    key = jax.random.PRNGKey(0)
    kx, kB, kW, kb = jax.random.split(key, 4)

    x = jax.random.normal(kx, (batch, input_size), dtype=jnp.float32)
    B = sigma * jax.random.normal(kB, (input_size, fourier_dim),
                                  dtype=jnp.float32)
    fan_in = fourier_dim * 2 + input_size
    bound = 1.0 / np.sqrt(fan_in)
    W = jax.random.uniform(kW, (embed_dim, fan_in), dtype=jnp.float32,
                           minval=-bound, maxval=bound)
    bias = jax.random.uniform(kb, (embed_dim,), dtype=jnp.float32,
                              minval=-bound, maxval=bound)

    # One-time weight preparation (hoisted out of the per-call path).
    params = jax.tree_util.tree_map(
        jax.block_until_ready, prepare_lff_params(B, W, bias))

    out = lff_forward(x, params)
    out = jax.block_until_ready(out)

    ref = lff_reference(x, B, W, bias)
    np.testing.assert_allclose(np.asarray(out), np.asarray(ref),
                               rtol=1e-5, atol=1e-5)
    print("KERNEL_OK")
</pallas_src>

<mosaic_0001>
module attributes {stable_mosaic.version = 11 : i64} {
  func.func @lff_kernel(%arg0: i32, %arg1: memref<16x12xf32, #tpu.memory_space<vmem>>, %arg2: memref<12x256xf32, #tpu.memory_space<vmem>>, %arg3: memref<256x128xf32, #tpu.memory_space<vmem>>, %arg4: memref<256x128xf32, #tpu.memory_space<vmem>>, %arg5: memref<12x128xf32, #tpu.memory_space<vmem>>, %arg6: memref<1x128xf32, #tpu.memory_space<vmem>>, %arg7: memref<16x128xf32, #tpu.memory_space<vmem>>) attributes {dimension_semantics = [#tpu.dimension_semantics<parallel>], iteration_bounds = array<i64: 1>, scalar_prefetch = 0 : i64, scratch_operands = 0 : i64, tpu.core_type = #tpu.core_type<tc>, window_params = [{transform_indices = @transform_0, window_bounds = array<i64: 16, 12>}, {pipeline_mode = #tpu.pipeline_mode<synchronous>, transform_indices = @transform_1, window_bounds = array<i64: 12, 256>}, {pipeline_mode = #tpu.pipeline_mode<synchronous>, transform_indices = @transform_2, window_bounds = array<i64: 256, 128>}, {pipeline_mode = #tpu.pipeline_mode<synchronous>, transform_indices = @transform_3, window_bounds = array<i64: 256, 128>}, {pipeline_mode = #tpu.pipeline_mode<synchronous>, transform_indices = @transform_4, window_bounds = array<i64: 12, 128>}, {pipeline_mode = #tpu.pipeline_mode<synchronous>, transform_indices = @transform_5, window_bounds = array<i64: 1, 128>}, {transform_indices = @transform_6, window_bounds = array<i64: 16, 128>}]} {
    %c0 = arith.constant 0 : index
    %c0_0 = arith.constant 0 : index
    %0 = vector.load %arg1[%c0, %c0_0] : memref<16x12xf32, #tpu.memory_space<vmem>>, vector<16x12xf32>
    %c0_1 = arith.constant 0 : index
    %c0_2 = arith.constant 0 : index
    %1 = vector.load %arg2[%c0_1, %c0_2] : memref<12x256xf32, #tpu.memory_space<vmem>>, vector<12x256xf32>
    %cst = arith.constant dense<0.000000e+00> : vector<16x256xf32>
    %2 = tpu.matmul %0, %1, %cst {dimension_numbers = #tpu.dot_dimension_numbers<[1], [0], [0], [1], [0, 0, 1, 1], [], []>} : vector<16x12xf32>, vector<12x256xf32>, vector<16x256xf32> -> vector<16x256xf32>
    %3 = math.sin %2 : vector<16x256xf32>
    %c0_3 = arith.constant 0 : index
    %c0_4 = arith.constant 0 : index
    %4 = vector.load %arg3[%c0_3, %c0_4] : memref<256x128xf32, #tpu.memory_space<vmem>>, vector<256x128xf32>
    %cst_5 = arith.constant dense<0.000000e+00> : vector<16x128xf32>
    %5 = tpu.matmul %3, %4, %cst_5 {dimension_numbers = #tpu.dot_dimension_numbers<[1], [0], [0], [1], [0, 0, 1, 1], [], []>} : vector<16x256xf32>, vector<256x128xf32>, vector<16x128xf32> -> vector<16x128xf32>
    %6 = math.cos %2 : vector<16x256xf32>
    %c0_6 = arith.constant 0 : index
    %c0_7 = arith.constant 0 : index
    %7 = vector.load %arg4[%c0_6, %c0_7] : memref<256x128xf32, #tpu.memory_space<vmem>>, vector<256x128xf32>
    %cst_8 = arith.constant dense<0.000000e+00> : vector<16x128xf32>
    %8 = tpu.matmul %6, %7, %cst_8 {dimension_numbers = #tpu.dot_dimension_numbers<[1], [0], [0], [1], [0, 0, 1, 1], [], []>} : vector<16x256xf32>, vector<256x128xf32>, vector<16x128xf32> -> vector<16x128xf32>
    %9 = arith.addf %5, %8 : vector<16x128xf32>
    %c0_9 = arith.constant 0 : index
    %c0_10 = arith.constant 0 : index
    %10 = vector.load %arg5[%c0_9, %c0_10] : memref<12x128xf32, #tpu.memory_space<vmem>>, vector<12x128xf32>
    %cst_11 = arith.constant dense<0.000000e+00> : vector<16x128xf32>
    %11 = tpu.matmul %0, %10, %cst_11 {dimension_numbers = #tpu.dot_dimension_numbers<[1], [0], [0], [1], [0, 0, 1, 1], [], []>} : vector<16x12xf32>, vector<12x128xf32>, vector<16x128xf32> -> vector<16x128xf32>
    %12 = arith.addf %9, %11 : vector<16x128xf32>
    %c0_12 = arith.constant 0 : index
    %c0_13 = arith.constant 0 : index
    %13 = vector.load %arg6[%c0_12, %c0_13] : memref<1x128xf32, #tpu.memory_space<vmem>>, vector<1x128xf32>
    %14 = vector.broadcast %13 : vector<1x128xf32> to vector<16x128xf32>
    %15 = arith.addf %12, %14 : vector<16x128xf32>
    %c0_14 = arith.constant 0 : index
    %c0_15 = arith.constant 0 : index
    %16 = vector.load %arg7[%c0_14, %c0_15] : memref<16x128xf32, #tpu.memory_space<vmem>>, vector<16x128xf32>
    tpu.vector_store %arg7[%c0_14, %c0_15], %15 {strides = array<i32>} : memref<16x128xf32, #tpu.memory_space<vmem>>, vector<16x128xf32>,
    return
  }
  func.func @transform_0(%arg0: i32) -> (i32, i32) {
    %c0_i32 = arith.constant 0 : i32
    %c0_i32_0 = arith.constant 0 : i32
    return %arg0, %c0_i32 : i32, i32
  }
  func.func @transform_1(%arg0: i32) -> (i32, i32) {
    %c0_i32 = arith.constant 0 : i32
    %c0_i32_0 = arith.constant 0 : i32
    %c0_i32_1 = arith.constant 0 : i32
    return %c0_i32, %c0_i32_0 : i32, i32
  }
  func.func @transform_2(%arg0: i32) -> (i32, i32) {
    %c0_i32 = arith.constant 0 : i32
    %c0_i32_0 = arith.constant 0 : i32
    %c0_i32_1 = arith.constant 0 : i32
    return %c0_i32, %c0_i32_0 : i32, i32
  }
  func.func @transform_3(%arg0: i32) -> (i32, i32) {
    %c0_i32 = arith.constant 0 : i32
    %c0_i32_0 = arith.constant 0 : i32
    %c0_i32_1 = arith.constant 0 : i32
    return %c0_i32, %c0_i32_0 : i32, i32
  }
  func.func @transform_4(%arg0: i32) -> (i32, i32) {
    %c0_i32 = arith.constant 0 : i32
    %c0_i32_0 = arith.constant 0 : i32
    %c0_i32_1 = arith.constant 0 : i32
    return %c0_i32, %c0_i32_0 : i32, i32
  }
  func.func @transform_5(%arg0: i32) -> (i32, i32) {
    %c0_i32 = arith.constant 0 : i32
    %c0_i32_0 = arith.constant 0 : i32
    %c0_i32_1 = arith.constant 0 : i32
    return %c0_i32, %c0_i32_0 : i32, i32
  }
  func.func @transform_6(%arg0: i32) -> (i32, i32) {
    %c0_i32 = arith.constant 0 : i32
    %c0_i32_0 = arith.constant 0 : i32
    return %arg0, %c0_i32 : i32, i32
  }
}

</mosaic_0001>

<llo_original>
// kernel: tpu_custom_call.1
$region0: #{tpu_custom_call.1}
  #allocation0 [shape = 'u32[]', space=smem, size = 0x4, offset = 0x4, fixed_abs, tag = 'smem constant byte address 0x4 - core index']
  #allocation1 [shape = 'u32[144,128]{1,0:T(1,128)}', space=vmem, size = 0x12000, scoped, tag = 'internal scratch']
  %s0 = inlined_call_operand.hbm [shape: f32[16,12], index: 0, kind: input, shape index: {}]
  %s1 = inlined_call_operand.hbm [shape: f32[12,256], index: 1, kind: input, shape index: {}]
  %s2 = inlined_call_operand.hbm [shape: f32[256,128], index: 2, kind: input, shape index: {}]
  %s3 = inlined_call_operand.hbm [shape: f32[256,128], index: 3, kind: input, shape index: {}]
  %s4 = inlined_call_operand.hbm [shape: f32[12,128], index: 4, kind: input, shape index: {}]
  %s5 = inlined_call_operand.vmem [shape: f32[1,128], index: 5, kind: input, shape index: {}]
  %s6 = inlined_call_operand.hbm [shape: f32[16,128], index: 6, kind: output, shape index: {}]
  %s7 = sld [smem:[#allocation0]]
  $region54: #{tpu_custom_call.1} parent=0
    _
  %s9 = ssub.s32 1, %s7
  %s10 = scalar_select 0, %s9, %s7
  $region1: #{tpu_custom_call.1} parent=0
    #allocation2 [shape = 'u8[8192]{0}', space=vmem, size = 0x2000, scoped, tag = 'input window, operand 0, single buffered']
    #allocation3 [shape = 's32[1]{0}', space=sflag, size = 0x4, scoped, tag = 'scoped memory for tpu_custom_call.1']
    #allocation4 [shape = 's32[1]{0}', space=sflag, size = 0x4, scoped, tag = 'scoped memory for tpu_custom_call.1']
    #allocation5 [shape = 'u8[16384]{0}', space=vmem, size = 0x4000, scoped, tag = 'input window, operand 1, single buffered']
    #allocation6 [shape = 's32[1]{0}', space=sflag, size = 0x4, scoped, tag = 'scoped memory for tpu_custom_call.1']
    #allocation7 [shape = 'u8[131072]{0}', space=vmem, size = 0x20000, scoped, tag = 'input window, operand 2, single buffered']
    #allocation8 [shape = 'u8[131072]{0}', space=vmem, size = 0x20000, scoped, tag = 'input window, operand 3, single buffered']
    #allocation9 [shape = 's32[1]{0}', space=sflag, size = 0x4, scoped, tag = 'scoped memory for tpu_custom_call.1']
    #allocation10 [shape = 'u8[8192]{0}', space=vmem, size = 0x2000, scoped, tag = 'input window, operand 4, single buffered']
    #allocation11 [shape = 'u8[8192]{0}', space=vmem, size = 0x2000, scoped, tag = 'output window, operand 0, single buffered']
    %11 = vsyncpa [#allocation3], 0
    %12 = vsyncpa [#allocation6], 0
    %13 = vsyncpa [#allocation9], 0
    %14 = vsyncpa [#allocation4], 0
    // Predicated region
    $region2: #{tpu_custom_call.1} parent=1 // pred_check
      _
    $region3: #{tpu_custom_call.1} parent=1 // pred_check_branch
      %16 = sbr.rel (0) target = $region5
    $region4: #{tpu_custom_call.1} parent=1 // pred_region
      %s18 = ssub.s32 256, 256
      %19 = vsyncadd [#allocation3], %s18
      %s20 = sshll.u32 [#allocation2], 4
      %s21 = int_to_ptr.vmem [resolvable:$true] %s20
      %26 = dma.hbm_to_vmem [thread:$0]  %s0, 256, %s21, [#allocation3], 128, 128, 8
    $region5: #{tpu_custom_call.1} parent=1 // pred_fallthru
      _
    // Predicated region
    $region6: #{tpu_custom_call.1} parent=1 // pred_check
      _
    $region7: #{tpu_custom_call.1} parent=1 // pred_check_branch
      %28 = sbr.rel (0) target = $region9
    $region8: #{tpu_custom_call.1} parent=1 // pred_region
      %s30 = ssub.s32 512, 512
      %31 = vsyncadd [#allocation6], %s30
      %s32 = sshll.u32 [#allocation5], 4
      %s33 = int_to_ptr.vmem [resolvable:$true] %s32
      %38 = dma.hbm_to_vmem [thread:$0]  %s1, 512, %s33, [#allocation6], 256, 256, 16
    $region9: #{tpu_custom_call.1} parent=1 // pred_fallthru
      _
    // Predicated region
    $region10: #{tpu_custom_call.1} parent=1 // pred_check
      _
    $region11: #{tpu_custom_call.1} parent=1 // pred_check_branch
      %40 = sbr.rel (0) target = $region13
    $region12: #{tpu_custom_call.1} parent=1 // pred_region
      %s42 = ssub.s32 4096, 4096
      %43 = vsyncadd [#allocation6], %s42
      %s44 = sshll.u32 [#allocation7], 4
      %s45 = int_to_ptr.vmem [resolvable:$true] %s44
      %50 = dma.hbm_to_vmem [thread:$0]  %s2, 4096, %s45, [#allocation6], 128, 128, 8
    $region13: #{tpu_custom_call.1} parent=1 // pred_fallthru
      _
    // Predicated region
    $region14: #{tpu_custom_call.1} parent=1 // pred_check
      _
    $region15: #{tpu_custom_call.1} parent=1 // pred_check_branch
      %52 = sbr.rel (0) target = $region17
    $region16: #{tpu_custom_call.1} parent=1 // pred_region
      %s54 = ssub.s32 4096, 4096
      %55 = vsyncadd [#allocation9], %s54
      %s56 = sshll.u32 [#allocation8], 4
      %s57 = int_to_ptr.vmem [resolvable:$true] %s56
      %62 = dma.hbm_to_vmem [thread:$0]  %s3, 4096, %s57, [#allocation9], 128, 128, 8
    $region17: #{tpu_custom_call.1} parent=1 // pred_fallthru
      _
    // Predicated region
    $region18: #{tpu_custom_call.1} parent=1 // pred_check
      _
    $region19: #{tpu_custom_call.1} parent=1 // pred_check_branch
      %64 = sbr.rel (0) target = $region21
    $region20: #{tpu_custom_call.1} parent=1 // pred_region
      %s66 = ssub.s32 256, 256
      %67 = vsyncadd [#allocation9], %s66
      %s68 = sshll.u32 [#allocation10], 4
      %s69 = int_to_ptr.vmem [resolvable:$true] %s68
      %74 = dma.hbm_to_vmem [thread:$0]  %s4, 256, %s69, [#allocation9], 128, 128, 8
    $region21: #{tpu_custom_call.1} parent=1 // pred_fallthru
      _
    // Predicated region
    $region22: #{tpu_custom_call.1} parent=1 // pred_check
      _
    $region23: #{tpu_custom_call.1} parent=1 // pred_check_branch
      %76 = sbr.rel (0) target = $region25
    $region24: #{tpu_custom_call.1} parent=1 // pred_region
      _
    $region25: #{tpu_custom_call.1} parent=1 // pred_fallthru
      _
    // Predicated region
    $region26: #{tpu_custom_call.1} parent=1 // pred_check
      _
    $region27: #{tpu_custom_call.1} parent=1 // pred_check_branch
      %78 = sbr.rel (0) target = $region29
    $region28: #{tpu_custom_call.1} parent=1 // pred_region
      %79 = dma.done [#allocation3], 256
    $region29: #{tpu_custom_call.1} parent=1 // pred_fallthru
      _
    // Predicated region
    $region30: #{tpu_custom_call.1} parent=1 // pred_check
      _
    $region31: #{tpu_custom_call.1} parent=1 // pred_check_branch
      %81 = sbr.rel (0) target = $region33
    $region32: #{tpu_custom_call.1} parent=1 // pred_region
      %82 = dma.done [#allocation6], 512
    $region33: #{tpu_custom_call.1} parent=1 // pred_fallthru
      _
    // Predicated region
    $region34: #{tpu_custom_call.1} parent=1 // pred_check
      _
    $region35: #{tpu_custom_call.1} parent=1 // pred_check_branch
      %84 = sbr.rel (0) target = $region37
    $region36: #{tpu_custom_call.1} parent=1 // pred_region
      %85 = dma.done [#allocation6], 4096
    $region37: #{tpu_custom_call.1} parent=1 // pred_fallthru
      _
    // Predicated region
    $region38: #{tpu_custom_call.1} parent=1 // pred_check
      _
    $region39: #{tpu_custom_call.1} parent=1 // pred_check_branch
      %87 = sbr.rel (0) target = $region41
    $region40: #{tpu_custom_call.1} parent=1 // pred_region
      %88 = dma.done [#allocation9], 4096
    $region41: #{tpu_custom_call.1} parent=1 // pred_fallthru
      _
    // Predicated region
    $region42: #{tpu_custom_call.1} parent=1 // pred_check
      _
    $region43: #{tpu_custom_call.1} parent=1 // pred_check_branch
      %90 = sbr.rel (0) target = $region45
    $region44: #{tpu_custom_call.1} parent=1 // pred_region
      %91 = dma.done [#allocation9], 256
    $region45: #{tpu_custom_call.1} parent=1 // pred_fallthru
      _
    %v92 = vld [vmem:[#allocation2] sm:$0xff]
    %v93 = vld [vmem:[#allocation2 + $0x8] sm:$0xff]
    %v94 = vld [vmem:[#allocation5] sm:$0xff]
    %v95 = vld [vmem:[#allocation5 + $0x8] sm:$0xff]
    %v96 = vld [vmem:[#allocation5 + $0x10] sm:$0xf]
    %v97 = vld [vmem:[#allocation5 + $0x18] sm:$0xf]
    %vm98 = vcmask 97280
    %v100 = vsel %vm98, %v92, 0
    %v103 = vsel %vm98, %v93, 0
    %vm105 = vcmask 1043456
    %v107 = vsel %vm105, %v96, 0
    %v110 = vsel %vm105, %v97, 0
    %112 = vmatprep.subr.mxu0 %v95
    %113 = vmatpush1.msra.mxu0 %v94
    %114 = vmatprep.subr.mxu0 %v110
    %115 = vmatpush1.msra.mxu0 %v107
    %116 = vmatprep.subr.mxu0 0.0
    %117 = vmatpush1.msra.mxu0 0.0
    %118 = vmatprep.subr.mxu0 0.0
    %119 = vmatpush1.msra.mxu0 0.0
    %120 = vmatprep.subr.mxu0 0.0
    %121 = vmatpush1.msra.mxu0 0.0
    %122 = vmatprep.subr.mxu0 0.0
    %123 = vmatpush1.msra.mxu0 0.0
    %124 = vmatprep.subr.mxu0 0.0
    %125 = vmatpush1.msra.mxu0 0.0
    %126 = vmatprep.subr.mxu0 0.0
    %127 = vmatpush1.msra.mxu0 0.0
    %128 = vmatprep.subr.mxu0 0.0
    %129 = vmatpush1.msra.mxu0 0.0
    %130 = vmatprep.subr.mxu0 0.0
    %131 = vmatpush1.msra.mxu0 0.0
    %132 = vmatprep.subr.mxu0 0.0
    %133 = vmatpush1.msra.mxu0 0.0
    %134 = vmatprep.subr.mxu0 0.0
    %135 = vmatpush1.msra.mxu0 0.0
    %136 = vmatprep.subr.mxu0 0.0
    %137 = vmatpush1.msra.mxu0 0.0
    %138 = vmatprep.subr.mxu0 0.0
    %139 = vmatpush1.msra.mxu0 0.0
    %140 = vmatprep.subr.mxu0 0.0
    %141 = vmatpush1.msra.mxu0 0.0
    %142 = vmatprep.subr.mxu0 0.0
    %143 = vmatpush1.msra.mxu0 0.0
    %144 = vmatprep.subr.mxu0 0.0
    %145 = vmatpush1.msra.mxu0 0.0
    %146 = vmatprep.subr.mxu0 0.0
    %147 = vmatpush1.msra.mxu0 0.0
    %148 = vmatprep.subr.mxu0 0.0
    %149 = vmatpush1.msra.mxu0 0.0
    %150 = vmatprep.subr.mxu0 0.0
    %151 = vmatpush1.msra.mxu0 0.0
    %152 = vmatprep.subr.mxu0 0.0
    %153 = vmatpush1.msra.mxu0 0.0
    %154 = vmatprep.subr.mxu0 0.0
    %155 = vmatpush1.msra.mxu0 0.0
    %156 = vmatprep.subr.mxu0 0.0
    %157 = vmatpush1.msra.mxu0 0.0
    %158 = vmatprep.subr.mxu0 0.0
    %159 = vmatpush1.msra.mxu0 0.0
    %160 = vmatprep.subr.mxu0 0.0
    %161 = vmatpush1.msra.mxu0 0.0
    %162 = vmatprep.subr.mxu0 0.0
    %163 = vmatpush1.msra.mxu0 0.0
    %164 = vmatprep.subr.mxu0 0.0
    %165 = vmatpush1.msra.mxu0 0.0
    %166 = vmatprep.subr.mxu0 0.0
    %167 = vmatpush1.msra.mxu0 0.0
    %168 = vmatprep.subr.mxu0 0.0
    %169 = vmatpush1.msra.mxu0 0.0
    %170 = vmatprep.subr.mxu0 0.0
    %171 = vmatpush1.msra.mxu0 0.0
    %172 = vmatprep.subr.mxu0 0.0
    %173 = vmatpush1.msra.mxu0 0.0
    %174 = vmatprep.subr.mxu0 0.0
    %175 = vmatpush1.msra.mxu0 0.0
    %176 = vmatprep.mubr.f32.mxu0 0.0
    %177 = vmatmul.mubr.f32.gmra.mrb[0].mxu0 %v100
    %v178 = vpop.f32.mrb[0].mxu0
    %v179 = vadd.f32 0.0, %v178
    %v180 = vpop.f32.mrb[0].mxu0
    %v181 = vadd.f32 0.0, %v180
    %182 = vmatprep.mubr.f32.mxu0 0.0
    %183 = vmatmul.mubr.f32.gmra.mrb[0].mxu0 %v103
    %v184 = vpop.f32.mrb[0].mxu0
    %v185 = vadd.f32 0.0, %v184
    %v186 = vpop.f32.mrb[0].mxu0
    %v187 = vadd.f32 0.0, %v186
    %188 = vdwg.mxu0
    %v189 = vand.u32 2147483647, %v179
    %vm190 = vcmp.le.f32.partialorder %v189, 0.7853982
    %vm191 = vcmp.lt.s32.totalorder %v179, 0
    %v192 = vand.u32 %v179, 2139095040
    %v193 = vshrl.u32 %v192, 23
    %v194 = vsub.s32 %v193, 127
    %v195 = vand.u32 2147483647, %v179
    %v196 = vand.u32 %v195, 8388607
    %v197 = vor.u32 %v196, 8388608
    %v198 = vsub.s32 0, %v197
    %v199 = vadd.s32 %v194, 1
    %vm200 = vcmp.gt.s32.totalorder %v199, 0
    %v201 = vsel %vm200, %v199, 0
    %v202 = vshrl.u32 %v201, 5
    %v203 = vand.u32 %v201, 31
    %v204 = vsub.s32 32, %v203
    %v205 = vshrl.u32 683565275, %v204
    %v206 = vshll.u32 683565275, %v203
    %v207 = vshrl.u32 2475754826, %v204
    %v208 = vor.u32 %v206, %v207
    %v209 = vshll.u32 2475754826, %v203
    %v210 = vshrl.u32 2131351028, %v204
    %v211 = vor.u32 %v209, %v210
    %v212 = vshll.u32 2131351028, %v203
    %v213 = vshrl.u32 2102212464, %v204
    %v214 = vor.u32 %v212, %v213
    %v215 = vshll.u32 2102212464, %v203
    %v216 = vshrl.u32 920167782, %v204
    %v217 = vor.u32 %v215, %v216
    %v218 = vshll.u32 920167782, %v203
    %v219 = vshrl.u32 1326507024, %v204
    %v220 = vor.u32 %v218, %v219
    %vm221 = vcmp.lt.s32.totalorder %v202, 1
    %vm222 = vcmp.lt.s32.totalorder %v202, 2
    %vm223 = vcmp.lt.s32.totalorder %v202, 3
    %vm224 = vcmp.lt.s32.totalorder %v202, 4
    %v225 = vsel %vm221, %v205, %v208
    %v226 = vsel %vm224, %v214, 2102212464
    %v227 = vsel %vm223, %v211, %v226
    %v228 = vsel %vm222, %v225, %v227
    %v229 = vsel %vm221, %v208, %v211
    %v230 = vsel %vm224, %v217, 920167782
    %v231 = vsel %vm223, %v214, %v230
    %v232 = vsel %vm222, %v229, %v231
    %v233 = vsel %vm221, %v211, %v214
    %v234 = vsel %vm224, %v220, 1326507024
    %v235 = vsel %vm223, %v217, %v234
    %v236 = vsel %vm222, %v233, %v235
    %v237 = vshll.u32 %v197, 8
    %v238 = vmul.u32.u64.compose %v237, %v236
    %v239 = vextract.low.u32 %v238
    %v240 = vextract.high.u32 %v238
    %v241 = vmul.u32.u64.compose %v237, %v232
    %v242 = vextract.low.u32 %v241
    %v243 = vextract.high.u32 %v241
    %v244 = vmul.u32 %v237, %v228
    %v245 = vadd.s32 %v240, %v242
    %vm246 = vc.u32 %v240, %v242
    %v247 = vadd.s32 %v243, 1
    %v248 = vsel %vm246, %v247, %v243
    %v249 = vadd.s32 %v244, %v248
    %v250 = vadd.s32 %v249, 536870912
    %v251 = vshrl.u32 %v250, 30
    %v252 = vshll.u32 %v251, 30
    %v253 = vsub.s32 %v249, %v252
    %vm254 = vcmp.lt.s32.totalorder %v253, 0
    %v255 = vsub.s32 0, %v253
    %v256 = vsel %vm254, %v255, %v253
    %v257 = vclz %v256
    %v258 = vsub.s32 %v257, 2
    %vm259 = vcmp.gt.s32.totalorder 0, %v258
    %v260 = vsel %vm259, 0, %v258
    %v261 = vsub.s32 32, %v260
    %v262 = vshll.u32 %v253, %v260
    %v263 = vshrl.u32 %v245, %v261
    %v264 = vor.u32 %v262, %v263
    %v265 = vsub.s32 4294967266, %v260
    %v266 = vadd.s32 %v265, 127
    %v267 = vshll.u32 %v266, 23
    %v268 = vor.u32 4788187, %v267
    %v269 = vand.u32 2147483647, %v268
    %v271 = vcvt.s32.f32 %v264
    %v272 = vmul.f32 %v271, %v269
    %v273 = vxor.u32 %v272, 2147483648
    %v274 = vsel %vm191, %v273, %v272
    %v275 = vsub.s32 4, %v251
    %v276 = vsel %vm191, %v275, %v251
    %v277 = vsel %vm190, %v179, %v274
    %v278 = vsel %vm190, 0, %v276
    %v279 = vcosq.f32.pop %v277
    %v280 = vsinq.f32.pop %v277
    %vm281 = vweird.f32 %v179
    %v282 = vadd.s32 %v278, 3
    %v283 = vand.u32 %v282, 3
    %vm284 = vcmp.lt.s32.totalorder %v283, 2
    %vm285 = vcmp.eq.s32.totalorder %v283, 0
    %v286 = vxor.u32 %v280, 2147483648
    %v287 = vsel %vm285, %v279, %v286
    %vm288 = vcmp.eq.s32.totalorder %v283, 2
    %v289 = vxor.u32 %v279, 2147483648
    %v290 = vsel %vm288, %v289, %v280
    %v291 = vsel %vm284, %v287, %v290
    %v292 = vsel %vm281, nan, %v291
    %v293 = vand.u32 2147483647, %v181
    %vm294 = vcmp.le.f32.partialorder %v293, 0.7853982
    %vm295 = vcmp.lt.s32.totalorder %v181, 0
    %v296 = vand.u32 %v181, 2139095040
    %v297 = vshrl.u32 %v296, 23
    %v298 = vsub.s32 %v297, 127
    %v299 = vand.u32 2147483647, %v181
    %v300 = vand.u32 %v299, 8388607
    %v301 = vor.u32 %v300, 8388608
    %v302 = vsub.s32 0, %v301
    %v303 = vadd.s32 %v298, 1
    %vm304 = vcmp.gt.s32.totalorder %v303, 0
    %v305 = vsel %vm304, %v303, 0
    %v306 = vshrl.u32 %v305, 5
    %v307 = vand.u32 %v305, 31
    %v308 = vsub.s32 32, %v307
    %v309 = vshrl.u32 683565275, %v308
    %v310 = vshll.u32 683565275, %v307
    %v311 = vshrl.u32 2475754826, %v308
    %v312 = vor.u32 %v310, %v311
    %v313 = vshll.u32 2475754826, %v307
    %v314 = vshrl.u32 2131351028, %v308
    %v315 = vor.u32 %v313, %v314
    %v316 = vshll.u32 2131351028, %v307
    %v317 = vshrl.u32 2102212464, %v308
    %v318 = vor.u32 %v316, %v317
    %v319 = vshll.u32 2102212464, %v307
    %v320 = vshrl.u32 920167782, %v308
    %v321 = vor.u32 %v319, %v320
    %v322 = vshll.u32 920167782, %v307
    %v323 = vshrl.u32 1326507024, %v308
    %v324 = vor.u32 %v322, %v323
    %vm325 = vcmp.lt.s32.totalorder %v306, 1
    %vm326 = vcmp.lt.s32.totalorder %v306, 2
    %vm327 = vcmp.lt.s32.totalorder %v306, 3
    %vm328 = vcmp.lt.s32.totalorder %v306, 4
    %v329 = vsel %vm325, %v309, %v312
    %v330 = vsel %vm328, %v318, 2102212464
    %v331 = vsel %vm327, %v315, %v330
    %v332 = vsel %vm326, %v329, %v331
    %v333 = vsel %vm325, %v312, %v315
    %v334 = vsel %vm328, %v321, 920167782
    %v335 = vsel %vm327, %v318, %v334
    %v336 = vsel %vm326, %v333, %v335
    %v337 = vsel %vm325, %v315, %v318
    %v338 = vsel %vm328, %v324, 1326507024
    %v339 = vsel %vm327, %v321, %v338
    %v340 = vsel %vm326, %v337, %v339
    %v341 = vshll.u32 %v301, 8
    %v342 = vmul.u32.u64.compose %v341, %v340
    %v343 = vextract.low.u32 %v342
    %v344 = vextract.high.u32 %v342
    %v345 = vmul.u32.u64.compose %v341, %v336
    %v346 = vextract.low.u32 %v345
    %v347 = vextract.high.u32 %v345
    %v348 = vmul.u32 %v341, %v332
    %v349 = vadd.s32 %v344, %v346
    %vm350 = vc.u32 %v344, %v346
    %v351 = vadd.s32 %v347, 1
    %v352 = vsel %vm350, %v351, %v347
    %v353 = vadd.s32 %v348, %v352
    %v354 = vadd.s32 %v353, 536870912
    %v355 = vshrl.u32 %v354, 30
    %v356 = vshll.u32 %v355, 30
    %v357 = vsub.s32 %v353, %v356
    %vm358 = vcmp.lt.s32.totalorder %v357, 0
    %v359 = vsub.s32 0, %v357
    %v360 = vsel %vm358, %v359, %v357
    %v361 = vclz %v360
    %v362 = vsub.s32 %v361, 2
    %vm363 = vcmp.gt.s32.totalorder 0, %v362
    %v364 = vsel %vm363, 0, %v362
    %v365 = vsub.s32 32, %v364
    %v366 = vshll.u32 %v357, %v364
    %v367 = vshrl.u32 %v349, %v365
    %v368 = vor.u32 %v366, %v367
    %v369 = vsub.s32 4294967266, %v364
    %v370 = vadd.s32 %v369, 127
    %v371 = vshll.u32 %v370, 23
    %v372 = vor.u32 4788187, %v371
    %v373 = vand.u32 2147483647, %v372
    %v375 = vcvt.s32.f32 %v368
    %v376 = vmul.f32 %v375, %v373
    %v377 = vxor.u32 %v376, 2147483648
    %v378 = vsel %vm295, %v377, %v376
    %v379 = vsub.s32 4, %v355
    %v380 = vsel %vm295, %v379, %v355
    %v381 = vsel %vm294, %v181, %v378
    %v382 = vsel %vm294, 0, %v380
    %v383 = vcosq.f32.pop %v381
    %v384 = vsinq.f32.pop %v381
    %vm385 = vweird.f32 %v181
    %v386 = vadd.s32 %v382, 3
    %v387 = vand.u32 %v386, 3
    %vm388 = vcmp.lt.s32.totalorder %v387, 2
    %vm389 = vcmp.eq.s32.totalorder %v387, 0
    %v390 = vxor.u32 %v384, 2147483648
    %v391 = vsel %vm389, %v383, %v390
    %vm392 = vcmp.eq.s32.totalorder %v387, 2
    %v393 = vxor.u32 %v383, 2147483648
    %v394 = vsel %vm392, %v393, %v384
    %v395 = vsel %vm388, %v391, %v394
    %v396 = vsel %vm385, nan, %v395
    %v397 = vand.u32 2147483647, %v185
    %vm398 = vcmp.le.f32.partialorder %v397, 0.7853982
    %vm399 = vcmp.lt.s32.totalorder %v185, 0
    %v400 = vand.u32 %v185, 2139095040
    %v401 = vshrl.u32 %v400, 23
    %v402 = vsub.s32 %v401, 127
    %v403 = vand.u32 2147483647, %v185
    %v404 = vand.u32 %v403, 8388607
    %v405 = vor.u32 %v404, 8388608
    %v406 = vsub.s32 0, %v405
    %v407 = vadd.s32 %v402, 1
    %vm408 = vcmp.gt.s32.totalorder %v407, 0
    %v409 = vsel %vm408, %v407, 0
    %v410 = vshrl.u32 %v409, 5
    %v411 = vand.u32 %v409, 31
    %v412 = vsub.s32 32, %v411
    %v413 = vshrl.u32 683565275, %v412
    %v414 = vshll.u32 683565275, %v411
    %v415 = vshrl.u32 2475754826, %v412
    %v416 = vor.u32 %v414, %v415
    %v417 = vshll.u32 2475754826, %v411
    %v418 = vshrl.u32 2131351028, %v412
    %v419 = vor.u32 %v417, %v418
    %v420 = vshll.u32 2131351028, %v411
    %v421 = vshrl.u32 2102212464, %v412
    %v422 = vor.u32 %v420, %v421
    %v423 = vshll.u32 2102212464, %v411
    %v424 = vshrl.u32 920167782, %v412
    %v425 = vor.u32 %v423, %v424
    %v426 = vshll.u32 920167782, %v411
    %v427 = vshrl.u32 1326507024, %v412
    %v428 = vor.u32 %v426, %v427
    %vm429 = vcmp.lt.s32.totalorder %v410, 1
    %vm430 = vcmp.lt.s32.totalorder %v410, 2
    %vm431 = vcmp.lt.s32.totalorder %v410, 3
    %vm432 = vcmp.lt.s32.totalorder %v410, 4
    %v433 = vsel %vm429, %v413, %v416
    %v434 = vsel %vm432, %v422, 2102212464
    %v435 = vsel %vm431, %v419, %v434
    %v436 = vsel %vm430, %v433, %v435
    %v437 = vsel %vm429, %v416, %v419
    %v438 = vsel %vm432, %v425, 920167782
    %v439 = vsel %vm431, %v422, %v438
    %v440 = vsel %vm430, %v437, %v439
    %v441 = vsel %vm429, %v419, %v422
    %v442 = vsel %vm432, %v428, 1326507024
    %v443 = vsel %vm431, %v425, %v442
    %v444 = vsel %vm430, %v441, %v443
    %v445 = vshll.u32 %v405, 8
    %v446 = vmul.u32.u64.compose %v445, %v444
    %v447 = vextract.low.u32 %v446
    %v448 = vextract.high.u32 %v446
    %v449 = vmul.u32.u64.compose %v445, %v440
    %v450 = vextract.low.u32 %v449
    %v451 = vextract.high.u32 %v449
    %v452 = vmul.u32 %v445, %v436
    %v453 = vadd.s32 %v448, %v450
    %vm454 = vc.u32 %v448, %v450
    %v455 = vadd.s32 %v451, 1
    %v456 = vsel %vm454, %v455, %v451
    %v457 = vadd.s32 %v452, %v456
    %v458 = vadd.s32 %v457, 536870912
    %v459 = vshrl.u32 %v458, 30
    %v460 = vshll.u32 %v459, 30
    %v461 = vsub.s32 %v457, %v460
    %vm462 = vcmp.lt.s32.totalorder %v461, 0
    %v463 = vsub.s32 0, %v461
    %v464 = vsel %vm462, %v463, %v461
    %v465 = vclz %v464
    %v466 = vsub.s32 %v465, 2
    %vm467 = vcmp.gt.s32.totalorder 0, %v466
    %v468 = vsel %vm467, 0, %v466
    %v469 = vsub.s32 32, %v468
    %v470 = vshll.u32 %v461, %v468
    %v471 = vshrl.u32 %v453, %v469
    %v472 = vor.u32 %v470, %v471
    %v473 = vsub.s32 4294967266, %v468
    %v474 = vadd.s32 %v473, 127
    %v475 = vshll.u32 %v474, 23
    %v476 = vor.u32 4788187, %v475
    %v477 = vand.u32 2147483647, %v476
    %v479 = vcvt.s32.f32 %v472
    %v480 = vmul.f32 %v479, %v477
    %v481 = vxor.u32 %v480, 2147483648
    %v482 = vsel %vm399, %v481, %v480
    %v483 = vsub.s32 4, %v459
    %v484 = vsel %vm399, %v483, %v459
    %v485 = vsel %vm398, %v185, %v482
    %v486 = vsel %vm398, 0, %v484
    %v487 = vcosq.f32.pop %v485
    %v488 = vsinq.f32.pop %v485
    %vm489 = vweird.f32 %v185
    %v490 = vadd.s32 %v486, 3
    %v491 = vand.u32 %v490, 3
    %vm492 = vcmp.lt.s32.totalorder %v491, 2
    %vm493 = vcmp.eq.s32.totalorder %v491, 0
    %v494 = vxor.u32 %v488, 2147483648
    %v495 = vsel %vm493, %v487, %v494
    %vm496 = vcmp.eq.s32.totalorder %v491, 2
    %v497 = vxor.u32 %v487, 2147483648
    %v498 = vsel %vm496, %v497, %v488
    %v499 = vsel %vm492, %v495, %v498
    %v500 = vsel %vm489, nan, %v499
    %v501 = vand.u32 2147483647, %v187
    %vm502 = vcmp.le.f32.partialorder %v501, 0.7853982
    %vm503 = vcmp.lt.s32.totalorder %v187, 0
    %v504 = vand.u32 %v187, 2139095040
    %v505 = vshrl.u32 %v504, 23
    %v506 = vsub.s32 %v505, 127
    %v507 = vand.u32 2147483647, %v187
    %v508 = vand.u32 %v507, 8388607
    %v509 = vor.u32 %v508, 8388608
    %v510 = vsub.s32 0, %v509
    %v511 = vadd.s32 %v506, 1
    %vm512 = vcmp.gt.s32.totalorder %v511, 0
    %v513 = vsel %vm512, %v511, 0
    %v514 = vshrl.u32 %v513, 5
    %v515 = vand.u32 %v513, 31
    %v516 = vsub.s32 32, %v515
    %v517 = vshrl.u32 683565275, %v516
    %v518 = vshll.u32 683565275, %v515
    %v519 = vshrl.u32 2475754826, %v516
    %v520 = vor.u32 %v518, %v519
    %v521 = vshll.u32 2475754826, %v515
    %v522 = vshrl.u32 2131351028, %v516
    %v523 = vor.u32 %v521, %v522
    %v524 = vshll.u32 2131351028, %v515
    %v525 = vshrl.u32 2102212464, %v516
    %v526 = vor.u32 %v524, %v525
    %v527 = vshll.u32 2102212464, %v515
    %v528 = vshrl.u32 920167782, %v516
    %v529 = vor.u32 %v527, %v528
    %v530 = vshll.u32 920167782, %v515
    %v531 = vshrl.u32 1326507024, %v516
    %v532 = vor.u32 %v530, %v531
    %vm533 = vcmp.lt.s32.totalorder %v514, 1
    %vm534 = vcmp.lt.s32.totalorder %v514, 2
    %vm535 = vcmp.lt.s32.totalorder %v514, 3
    %vm536 = vcmp.lt.s32.totalorder %v514, 4
    %v537 = vsel %vm533, %v517, %v520
    %v538 = vsel %vm536, %v526, 2102212464
    %v539 = vsel %vm535, %v523, %v538
    %v540 = vsel %vm534, %v537, %v539
    %v541 = vsel %vm533, %v520, %v523
    %v542 = vsel %vm536, %v529, 920167782
    %v543 = vsel %vm535, %v526, %v542
    %v544 = vsel %vm534, %v541, %v543
    %v545 = vsel %vm533, %v523, %v526
    %v546 = vsel %vm536, %v532, 1326507024
    %v547 = vsel %vm535, %v529, %v546
    %v548 = vsel %vm534, %v545, %v547
    %v549 = vshll.u32 %v509, 8
    %v550 = vmul.u32.u64.compose %v549, %v548
    %v551 = vextract.low.u32 %v550
    %v552 = vextract.high.u32 %v550
    %v553 = vmul.u32.u64.compose %v549, %v544
    %v554 = vextract.low.u32 %v553
    %v555 = vextract.high.u32 %v553
    %v556 = vmul.u32 %v549, %v540
    %v557 = vadd.s32 %v552, %v554
    %vm558 = vc.u32 %v552, %v554
    %v559 = vadd.s32 %v555, 1
    %v560 = vsel %vm558, %v559, %v555
    %v561 = vadd.s32 %v556, %v560
    %v562 = vadd.s32 %v561, 536870912
    %v563 = vshrl.u32 %v562, 30
    %v564 = vshll.u32 %v563, 30
    %v565 = vsub.s32 %v561, %v564
    %vm566 = vcmp.lt.s32.totalorder %v565, 0
    %v567 = vsub.s32 0, %v565
    %v568 = vsel %vm566, %v567, %v565
    %v569 = vclz %v568
    %v570 = vsub.s32 %v569, 2
    %vm571 = vcmp.gt.s32.totalorder 0, %v570
    %v572 = vsel %vm571, 0, %v570
    %v573 = vsub.s32 32, %v572
    %v574 = vshll.u32 %v565, %v572
    %v575 = vshrl.u32 %v557, %v573
    %v576 = vor.u32 %v574, %v575
    %v577 = vsub.s32 4294967266, %v572
    %v578 = vadd.s32 %v577, 127
    %v579 = vshll.u32 %v578, 23
    %v580 = vor.u32 4788187, %v579
    %v581 = vand.u32 2147483647, %v580
    %v583 = vcvt.s32.f32 %v576
    %v584 = vmul.f32 %v583, %v581
    %v585 = vxor.u32 %v584, 2147483648
    %v586 = vsel %vm503, %v585, %v584
    %v587 = vsub.s32 4, %v563
    %v588 = vsel %vm503, %v587, %v563
    %v589 = vsel %vm502, %v187, %v586
    %v590 = vsel %vm502, 0, %v588
    %v591 = vcosq.f32.pop %v589
    %v592 = vsinq.f32.pop %v589
    %vm593 = vweird.f32 %v187
    %v594 = vadd.s32 %v590, 3
    %v595 = vand.u32 %v594, 3
    %vm596 = vcmp.lt.s32.totalorder %v595, 2
    %vm597 = vcmp.eq.s32.totalorder %v595, 0
    %v598 = vxor.u32 %v592, 2147483648
    %v599 = vsel %vm597, %v591, %v598
    %vm600 = vcmp.eq.s32.totalorder %v595, 2
    %v601 = vxor.u32 %v591, 2147483648
    %v602 = vsel %vm600, %v601, %v592
    %v603 = vsel %vm596, %v599, %v602
    %v604 = vsel %vm593, nan, %v603
    %v605 = vld [vmem:[#allocation7] sm:$0xff]
    %v606 = vld [vmem:[#allocation7 + $0x8] sm:$0xff]
    %v607 = vld [vmem:[#allocation7 + $0x10] sm:$0xff]
    %v608 = vld [vmem:[#allocation7 + $0x18] sm:$0xff]
    %v609 = vld [vmem:[#allocation7 + $0x20] sm:$0xff]
    %v610 = vld [vmem:[#allocation7 + $0x28] sm:$0xff]
    %v611 = vld [vmem:[#allocation7 + $0x30] sm:$0xff]
    %v612 = vld [vmem:[#allocation7 + $0x38] sm:$0xff]
    %v613 = vld [vmem:[#allocation7 + $0x40] sm:$0xff]
    %v614 = vld [vmem:[#allocation7 + $0x48] sm:$0xff]
    %v615 = vld [vmem:[#allocation7 + $0x50] sm:$0xff]
    %v616 = vld [vmem:[#allocation7 + $0x58] sm:$0xff]
    %v617 = vld [vmem:[#allocation7 + $0x60] sm:$0xff]
    %v618 = vld [vmem:[#allocation7 + $0x68] sm:$0xff]
    %v619 = vld [vmem:[#allocation7 + $0x70] sm:$0xff]
    %v620 = vld [vmem:[#allocation7 + $0x78] sm:$0xff]
    %v621 = vld [vmem:[#allocation7 + $0x80] sm:$0xff]
    %v622 = vld [vmem:[#allocation7 + $0x88] sm:$0xff]
    %v623 = vld [vmem:[#allocation7 + $0x90] sm:$0xff]
    %v624 = vld [vmem:[#allocation7 + $0x98] sm:$0xff]
    %v625 = vld [vmem:[#allocation7 + $0xa0] sm:$0xff]
    %v626 = vld [vmem:[#allocation7 + $0xa8] sm:$0xff]
    %v627 = vld [vmem:[#allocation7 + $0xb0] sm:$0xff]
    %v628 = vld [vmem:[#allocation7 + $0xb8] sm:$0xff]
    %v629 = vld [vmem:[#allocation7 + $0xc0] sm:$0xff]
    %v630 = vld [vmem:[#allocation7 + $0xc8] sm:$0xff]
    %v631 = vld [vmem:[#allocation7 + $0xd0] sm:$0xff]
    %v632 = vld [vmem:[#allocation7 + $0xd8] sm:$0xff]
    %v633 = vld [vmem:[#allocation7 + $0xe0] sm:$0xff]
    %v634 = vld [vmem:[#allocation7 + $0xe8] sm:$0xff]
    %v635 = vld [vmem:[#allocation7 + $0xf0] sm:$0xff]
    %v636 = vld [vmem:[#allocation7 + $0xf8] sm:$0xff]
    %v637 = vand.u32 2147483647, %v179
    %vm638 = vcmp.le.f32.partialorder %v637, 0.7853982
    %vm639 = vcmp.lt.s32.totalorder %v179, 0
    %v640 = vand.u32 %v179, 2139095040
    %v641 = vshrl.u32 %v640, 23
    %v642 = vsub.s32 %v641, 127
    %v643 = vand.u32 2147483647, %v179
    %v644 = vand.u32 %v643, 8388607
    %v645 = vor.u32 %v644, 8388608
    %v646 = vsub.s32 0, %v645
    %v647 = vadd.s32 %v642, 1
    %vm648 = vcmp.gt.s32.totalorder %v647, 0
    %v649 = vsel %vm648, %v647, 0
    %v650 = vshrl.u32 %v649, 5
    %v651 = vand.u32 %v649, 31
    %v652 = vsub.s32 32, %v651
    %v653 = vshrl.u32 683565275, %v652
    %v654 = vshll.u32 683565275, %v651
    %v655 = vshrl.u32 2475754826, %v652
    %v656 = vor.u32 %v654, %v655
    %v657 = vshll.u32 2475754826, %v651
    %v658 = vshrl.u32 2131351028, %v652
    %v659 = vor.u32 %v657, %v658
    %v660 = vshll.u32 2131351028, %v651
    %v661 = vshrl.u32 2102212464, %v652
    %v662 = vor.u32 %v660, %v661
    %v663 = vshll.u32 2102212464, %v651
    %v664 = vshrl.u32 920167782, %v652
    %v665 = vor.u32 %v663, %v664
    %v666 = vshll.u32 920167782, %v651
    %v667 = vshrl.u32 1326507024, %v652
    %v668 = vor.u32 %v666, %v667
    %vm669 = vcmp.lt.s32.totalorder %v650, 1
    %vm670 = vcmp.lt.s32.totalorder %v650, 2
    %vm671 = vcmp.lt.s32.totalorder %v650, 3
    %vm672 = vcmp.lt.s32.totalorder %v650, 4
    %v673 = vsel %vm669, %v653, %v656
    %v674 = vsel %vm672, %v662, 2102212464
    %v675 = vsel %vm671, %v659, %v674
    %v676 = vsel %vm670, %v673, %v675
    %v677 = vsel %vm669, %v656, %v659
    %v678 = vsel %vm672, %v665, 920167782
    %v679 = vsel %vm671, %v662, %v678
    %v680 = vsel %vm670, %v677, %v679
    %v681 = vsel %vm669, %v659, %v662
    %v682 = vsel %vm672, %v668, 1326507024
    %v683 = vsel %vm671, %v665, %v682
    %v684 = vsel %vm670, %v681, %v683
    %v685 = vshll.u32 %v645, 8
    %v686 = vmul.u32.u64.compose %v685, %v684
    %v687 = vextract.low.u32 %v686
    %v688 = vextract.high.u32 %v686
    %v689 = vmul.u32.u64.compose %v685, %v680
    %v690 = vextract.low.u32 %v689
    %v691 = vextract.high.u32 %v689
    %v692 = vmul.u32 %v685, %v676
    %v693 = vadd.s32 %v688, %v690
    %vm694 = vc.u32 %v688, %v690
    %v695 = vadd.s32 %v691, 1
    %v696 = vsel %vm694, %v695, %v691
    %v697 = vadd.s32 %v692, %v696
    %v698 = vadd.s32 %v697, 536870912
    %v699 = vshrl.u32 %v698, 30
    %v700 = vshll.u32 %v699, 30
    %v701 = vsub.s32 %v697, %v700
    %vm702 = vcmp.lt.s32.totalorder %v701, 0
    %v703 = vsub.s32 0, %v701
    %v704 = vsel %vm702, %v703, %v701
    %v705 = vclz %v704
    %v706 = vsub.s32 %v705, 2
    %vm707 = vcmp.gt.s32.totalorder 0, %v706
    %v708 = vsel %vm707, 0, %v706
    %v709 = vsub.s32 32, %v708
    %v710 = vshll.u32 %v701, %v708
    %v711 = vshrl.u32 %v693, %v709
    %v712 = vor.u32 %v710, %v711
    %v713 = vsub.s32 4294967266, %v708
    %v714 = vadd.s32 %v713, 127
    %v715 = vshll.u32 %v714, 23
    %v716 = vor.u32 4788187, %v715
    %v717 = vand.u32 2147483647, %v716
    %v719 = vcvt.s32.f32 %v712
    %v720 = vmul.f32 %v719, %v717
    %v721 = vxor.u32 %v720, 2147483648
    %v722 = vsel %vm639, %v721, %v720
    %v723 = vsub.s32 4, %v699
    %v724 = vsel %vm639, %v723, %v699
    %v725 = vsel %vm638, %v179, %v722
    %v726 = vsel %vm638, 0, %v724
    %v727 = vcosq.f32.pop %v725
    %v728 = vsinq.f32.pop %v725
    %vm729 = vweird.f32 %v179
    %v730 = vand.u32 %v726, 3
    %vm731 = vcmp.lt.s32.totalorder %v730, 2
    %vm732 = vcmp.eq.s32.totalorder %v730, 0
    %v733 = vxor.u32 %v728, 2147483648
    %v734 = vsel %vm732, %v727, %v733
    %vm735 = vcmp.eq.s32.totalorder %v730, 2
    %v736 = vxor.u32 %v727, 2147483648
    %v737 = vsel %vm735, %v736, %v728
    %v738 = vsel %vm731, %v734, %v737
    %v739 = vsel %vm729, nan, %v738
    %v740 = vand.u32 2147483647, %v181
    %vm741 = vcmp.le.f32.partialorder %v740, 0.7853982
    %vm742 = vcmp.lt.s32.totalorder %v181, 0
    %v743 = vand.u32 %v181, 2139095040
    %v744 = vshrl.u32 %v743, 23
    %v745 = vsub.s32 %v744, 127
    %v746 = vand.u32 2147483647, %v181
    %v747 = vand.u32 %v746, 8388607
    %v748 = vor.u32 %v747, 8388608
    %v749 = vsub.s32 0, %v748
    %v750 = vadd.s32 %v745, 1
    %vm751 = vcmp.gt.s32.totalorder %v750, 0
    %v752 = vsel %vm751, %v750, 0
    %v753 = vshrl.u32 %v752, 5
    %v754 = vand.u32 %v752, 31
    %v755 = vsub.s32 32, %v754
    %v756 = vshrl.u32 683565275, %v755
    %v757 = vshll.u32 683565275, %v754
    %v758 = vshrl.u32 2475754826, %v755
    %v759 = vor.u32 %v757, %v758
    %v760 = vshll.u32 2475754826, %v754
    %v761 = vshrl.u32 2131351028, %v755
    %v762 = vor.u32 %v760, %v761
    %v763 = vshll.u32 2131351028, %v754
    %v764 = vshrl.u32 2102212464, %v755
    %v765 = vor.u32 %v763, %v764
    %v766 = vshll.u32 2102212464, %v754
    %v767 = vshrl.u32 920167782, %v755
    %v768 = vor.u32 %v766, %v767
    %v769 = vshll.u32 920167782, %v754
    %v770 = vshrl.u32 1326507024, %v755
    %v771 = vor.u32 %v769, %v770
    %vm772 = vcmp.lt.s32.totalorder %v753, 1
    %vm773 = vcmp.lt.s32.totalorder %v753, 2
    %vm774 = vcmp.lt.s32.totalorder %v753, 3
    %vm775 = vcmp.lt.s32.totalorder %v753, 4
    %v776 = vsel %vm772, %v756, %v759
    %v777 = vsel %vm775, %v765, 2102212464
    %v778 = vsel %vm774, %v762, %v777
    %v779 = vsel %vm773, %v776, %v778
    %v780 = vsel %vm772, %v759, %v762
    %v781 = vsel %vm775, %v768, 920167782
    %v782 = vsel %vm774, %v765, %v781
    %v783 = vsel %vm773, %v780, %v782
    %v784 = vsel %vm772, %v762, %v765
    %v785 = vsel %vm775, %v771, 1326507024
    %v786 = vsel %vm774, %v768, %v785
    %v787 = vsel %vm773, %v784, %v786
    %v788 = vshll.u32 %v748, 8
    %v789 = vmul.u32.u64.compose %v788, %v787
    %v790 = vextract.low.u32 %v789
    %v791 = vextract.high.u32 %v789
    %v792 = vmul.u32.u64.compose %v788, %v783
    %v793 = vextract.low.u32 %v792
    %v794 = vextract.high.u32 %v792
    %v795 = vmul.u32 %v788, %v779
    %v796 = vadd.s32 %v791, %v793
    %vm797 = vc.u32 %v791, %v793
    %v798 = vadd.s32 %v794, 1
    %v799 = vsel %vm797, %v798, %v794
    %v800 = vadd.s32 %v795, %v799
    %v801 = vadd.s32 %v800, 536870912
    %v802 = vshrl.u32 %v801, 30
    %v803 = vshll.u32 %v802, 30
    %v804 = vsub.s32 %v800, %v803
    %vm805 = vcmp.lt.s32.totalorder %v804, 0
    %v806 = vsub.s32 0, %v804
    %v807 = vsel %vm805, %v806, %v804
    %v808 = vclz %v807
    %v809 = vsub.s32 %v808, 2
    %vm810 = vcmp.gt.s32.totalorder 0, %v809
    %v811 = vsel %vm810, 0, %v809
    %v812 = vsub.s32 32, %v811
    %v813 = vshll.u32 %v804, %v811
    %v814 = vshrl.u32 %v796, %v812
    %v815 = vor.u32 %v813, %v814
    %v816 = vsub.s32 4294967266, %v811
    %v817 = vadd.s32 %v816, 127
    %v818 = vshll.u32 %v817, 23
    %v819 = vor.u32 4788187, %v818
    %v820 = vand.u32 2147483647, %v819
    %v822 = vcvt.s32.f32 %v815
    %v823 = vmul.f32 %v822, %v820
    %v824 = vxor.u32 %v823, 2147483648
    %v825 = vsel %vm742, %v824, %v823
    %v826 = vsub.s32 4, %v802
    %v827 = vsel %vm742, %v826, %v802
    %v828 = vsel %vm741, %v181, %v825
    %v829 = vsel %vm741, 0, %v827
    %v830 = vcosq.f32.pop %v828
    %v831 = vsinq.f32.pop %v828
    %vm832 = vweird.f32 %v181
    %v833 = vand.u32 %v829, 3
    %vm834 = vcmp.lt.s32.totalorder %v833, 2
    %vm835 = vcmp.eq.s32.totalorder %v833, 0
    %v836 = vxor.u32 %v831, 2147483648
    %v837 = vsel %vm835, %v830, %v836
    %vm838 = vcmp.eq.s32.totalorder %v833, 2
    %v839 = vxor.u32 %v830, 2147483648
    %v840 = vsel %vm838, %v839, %v831
    %v841 = vsel %vm834, %v837, %v840
    %v842 = vsel %vm832, nan, %v841
    %v843 = vand.u32 2147483647, %v185
    %vm844 = vcmp.le.f32.partialorder %v843, 0.7853982
    %vm845 = vcmp.lt.s32.totalorder %v185, 0
    %v846 = vand.u32 %v185, 2139095040
    %v847 = vshrl.u32 %v846, 23
    %v848 = vsub.s32 %v847, 127
    %v849 = vand.u32 2147483647, %v185
    %v850 = vand.u32 %v849, 8388607
    %v851 = vor.u32 %v850, 8388608
    %v852 = vsub.s32 0, %v851
    %v853 = vadd.s32 %v848, 1
    %vm854 = vcmp.gt.s32.totalorder %v853, 0
    %v855 = vsel %vm854, %v853, 0
    %v856 = vshrl.u32 %v855, 5
    %v857 = vand.u32 %v855, 31
    %v858 = vsub.s32 32, %v857
    %v859 = vshrl.u32 683565275, %v858
    %v860 = vshll.u32 683565275, %v857
    %v861 = vshrl.u32 2475754826, %v858
    %v862 = vor.u32 %v860, %v861
    %v863 = vshll.u32 2475754826, %v857
    %v864 = vshrl.u32 2131351028, %v858
    %v865 = vor.u32 %v863, %v864
    %v866 = vshll.u32 2131351028, %v857
    %v867 = vshrl.u32 2102212464, %v858
    %v868 = vor.u32 %v866, %v867
    %v869 = vshll.u32 2102212464, %v857
    %v870 = vshrl.u32 920167782, %v858
    %v871 = vor.u32 %v869, %v870
    %v872 = vshll.u32 920167782, %v857
    %v873 = vshrl.u32 1326507024, %v858
    %v874 = vor.u32 %v872, %v873
    %vm875 = vcmp.lt.s32.totalorder %v856, 1
    %vm876 = vcmp.lt.s32.totalorder %v856, 2
    %vm877 = vcmp.lt.s32.totalorder %v856, 3
    %vm878 = vcmp.lt.s32.totalorder %v856, 4
    %v879 = vsel %vm875, %v859, %v862
    %v880 = vsel %vm878, %v868, 2102212464
    %v881 = vsel %vm877, %v865, %v880
    %v882 = vsel %vm876, %v879, %v881
    %v883 = vsel %vm875, %v862, %v865
    %v884 = vsel %vm878, %v871, 920167782
    %v885 = vsel %vm877, %v868, %v884
    %v886 = vsel %vm876, %v883, %v885
    %v887 = vsel %vm875, %v865, %v868
    %v888 = vsel %vm878, %v874, 1326507024
    %v889 = vsel %vm877, %v871, %v888
    %v890 = vsel %vm876, %v887, %v889
    %v891 = vshll.u32 %v851, 8
    %v892 = vmul.u32.u64.compose %v891, %v890
    %v893 = vextract.low.u32 %v892
    %v894 = vextract.high.u32 %v892
    %v895 = vmul.u32.u64.compose %v891, %v886
    %v896 = vextract.low.u32 %v895
    %v897 = vextract.high.u32 %v895
    %v898 = vmul.u32 %v891, %v882
    %v899 = vadd.s32 %v894, %v896
    %vm900 = vc.u32 %v894, %v896
    %v901 = vadd.s32 %v897, 1
    %v902 = vsel %vm900, %v901, %v897
    %v903 = vadd.s32 %v898, %v902
    %v904 = vadd.s32 %v903, 536870912
    %v905 = vshrl.u32 %v904, 30
    %v906 = vshll.u32 %v905, 30
    %v907 = vsub.s32 %v903, %v906
    %vm908 = vcmp.lt.s32.totalorder %v907, 0
    %v909 = vsub.s32 0, %v907
    %v910 = vsel %vm908, %v909, %v907
    %v911 = vclz %v910
    %v912 = vsub.s32 %v911, 2
    %vm913 = vcmp.gt.s32.totalorder 0, %v912
    %v914 = vsel %vm913, 0, %v912
    %v915 = vsub.s32 32, %v914
    %v916 = vshll.u32 %v907, %v914
    %v917 = vshrl.u32 %v899, %v915
    %v918 = vor.u32 %v916, %v917
    %v919 = vsub.s32 4294967266, %v914
    %v920 = vadd.s32 %v919, 127
    %v921 = vshll.u32 %v920, 23
    %v922 = vor.u32 4788187, %v921
    %v923 = vand.u32 2147483647, %v922
    %v925 = vcvt.s32.f32 %v918
    %v926 = vmul.f32 %v925, %v923
    %v927 = vxor.u32 %v926, 2147483648
    %v928 = vsel %vm845, %v927, %v926
    %v929 = vsub.s32 4, %v905
    %v930 = vsel %vm845, %v929, %v905
    %v931 = vsel %vm844, %v185, %v928
    %v932 = vsel %vm844, 0, %v930
    %v933 = vcosq.f32.pop %v931
    %v934 = vsinq.f32.pop %v931
    %vm935 = vweird.f32 %v185
    %v936 = vand.u32 %v932, 3
    %vm937 = vcmp.lt.s32.totalorder %v936, 2
    %vm938 = vcmp.eq.s32.totalorder %v936, 0
    %v939 = vxor.u32 %v934, 2147483648
    %v940 = vsel %vm938, %v933, %v939
    %vm941 = vcmp.eq.s32.totalorder %v936, 2
    %v942 = vxor.u32 %v933, 2147483648
    %v943 = vsel %vm941, %v942, %v934
    %v944 = vsel %vm937, %v940, %v943
    %v945 = vsel %vm935, nan, %v944
    %v946 = vand.u32 2147483647, %v187
    %vm947 = vcmp.le.f32.partialorder %v946, 0.7853982
    %vm948 = vcmp.lt.s32.totalorder %v187, 0
    %v949 = vand.u32 %v187, 2139095040
    %v950 = vshrl.u32 %v949, 23
    %v951 = vsub.s32 %v950, 127
    %v952 = vand.u32 2147483647, %v187
    %v953 = vand.u32 %v952, 8388607
    %v954 = vor.u32 %v953, 8388608
    %v955 = vsub.s32 0, %v954
    %v956 = vadd.s32 %v951, 1
    %vm957 = vcmp.gt.s32.totalorder %v956, 0
    %v958 = vsel %vm957, %v956, 0
    %v959 = vshrl.u32 %v958, 5
    %v960 = vand.u32 %v958, 31
    %v961 = vsub.s32 32, %v960
    %v962 = vshrl.u32 683565275, %v961
    %v963 = vshll.u32 683565275, %v960
    %v964 = vshrl.u32 2475754826, %v961
    %v965 = vor.u32 %v963, %v964
    %v966 = vshll.u32 2475754826, %v960
    %v967 = vshrl.u32 2131351028, %v961
    %v968 = vor.u32 %v966, %v967
    %v969 = vshll.u32 2131351028, %v960
    %v970 = vshrl.u32 2102212464, %v961
    %v971 = vor.u32 %v969, %v970
    %v972 = vshll.u32 2102212464, %v960
    %v973 = vshrl.u32 920167782, %v961
    %v974 = vor.u32 %v972, %v973
    %v975 = vshll.u32 920167782, %v960
    %v976 = vshrl.u32 1326507024, %v961
    %v977 = vor.u32 %v975, %v976
    %vm978 = vcmp.lt.s32.totalorder %v959, 1
    %vm979 = vcmp.lt.s32.totalorder %v959, 2
    %vm980 = vcmp.lt.s32.totalorder %v959, 3
    %vm981 = vcmp.lt.s32.totalorder %v959, 4
    %v982 = vsel %vm978, %v962, %v965
    %v983 = vsel %vm981, %v971, 2102212464
    %v984 = vsel %vm980, %v968, %v983
    %v985 = vsel %vm979, %v982, %v984
    %v986 = vsel %vm978, %v965, %v968
    %v987 = vsel %vm981, %v974, 920167782
    %v988 = vsel %vm980, %v971, %v987
    %v989 = vsel %vm979, %v986, %v988
    %v990 = vsel %vm978, %v968, %v971
    %v991 = vsel %vm981, %v977, 1326507024
    %v992 = vsel %vm980, %v974, %v991
    %v993 = vsel %vm979, %v990, %v992
    %v994 = vshll.u32 %v954, 8
    %v995 = vmul.u32.u64.compose %v994, %v993
    %v996 = vextract.low.u32 %v995
    %v997 = vextract.high.u32 %v995
    %v998 = vmul.u32.u64.compose %v994, %v989
    %v999 = vextract.low.u32 %v998
    %v1000 = vextract.high.u32 %v998
    %v1001 = vmul.u32 %v994, %v985
    %v1002 = vadd.s32 %v997, %v999
    %vm1003 = vc.u32 %v997, %v999
    %v1004 = vadd.s32 %v1000, 1
    %v1005 = vsel %vm1003, %v1004, %v1000
    %v1006 = vadd.s32 %v1001, %v1005
    %v1007 = vadd.s32 %v1006, 536870912
    %v1008 = vshrl.u32 %v1007, 30
    %v1009 = vshll.u32 %v1008, 30
    %v1010 = vsub.s32 %v1006, %v1009
    %vm1011 = vcmp.lt.s32.totalorder %v1010, 0
    %v1012 = vsub.s32 0, %v1010
    %v1013 = vsel %vm1011, %v1012, %v1010
    %v1014 = vclz %v1013
    %v1015 = vsub.s32 %v1014, 2
    %vm1016 = vcmp.gt.s32.totalorder 0, %v1015
    %v1017 = vsel %vm1016, 0, %v1015
    %v1018 = vsub.s32 32, %v1017
    %v1019 = vshll.u32 %v1010, %v1017
    %v1020 = vshrl.u32 %v1002, %v1018
    %v1021 = vor.u32 %v1019, %v1020
    %v1022 = vsub.s32 4294967266, %v1017
    %v1023 = vadd.s32 %v1022, 127
    %v1024 = vshll.u32 %v1023, 23
    %v1025 = vor.u32 4788187, %v1024
    %v1026 = vand.u32 2147483647, %v1025
    %v1028 = vcvt.s32.f32 %v1021
    %v1029 = vmul.f32 %v1028, %v1026
    %v1030 = vxor.u32 %v1029, 2147483648
    %v1031 = vsel %vm948, %v1030, %v1029
    %v1032 = vsub.s32 4, %v1008
    %v1033 = vsel %vm948, %v1032, %v1008
    %v1034 = vsel %vm947, %v187, %v1031
    %v1035 = vsel %vm947, 0, %v1033
    %v1036 = vcosq.f32.pop %v1034
    %v1037 = vsinq.f32.pop %v1034
    %vm1038 = vweird.f32 %v187
    %v1039 = vand.u32 %v1035, 3
    %vm1040 = vcmp.lt.s32.totalorder %v1039, 2
    %vm1041 = vcmp.eq.s32.totalorder %v1039, 0
    %v1042 = vxor.u32 %v1037, 2147483648
    %v1043 = vsel %vm1041, %v1036, %v1042
    %vm1044 = vcmp.eq.s32.totalorder %v1039, 2
    %v1045 = vxor.u32 %v1036, 2147483648
    %v1046 = vsel %vm1044, %v1045, %v1037
    %v1047 = vsel %vm1040, %v1043, %v1046
    %v1048 = vsel %vm1038, nan, %v1047
    %v1049 = vld [vmem:[#allocation8] sm:$0xff]
    %v1050 = vld [vmem:[#allocation8 + $0x8] sm:$0xff]
    %v1051 = vld [vmem:[#allocation8 + $0x10] sm:$0xff]
    %v1052 = vld [vmem:[#allocation8 + $0x18] sm:$0xff]
    %v1053 = vld [vmem:[#allocation8 + $0x20] sm:$0xff]
    %v1054 = vld [vmem:[#allocation8 + $0x28] sm:$0xff]
    %v1055 = vld [vmem:[#allocation8 + $0x30] sm:$0xff]
    %v1056 = vld [vmem:[#allocation8 + $0x38] sm:$0xff]
    %v1057 = vld [vmem:[#allocation8 + $0x40] sm:$0xff]
    %v1058 = vld [vmem:[#allocation8 + $0x48] sm:$0xff]
    %v1059 = vld [vmem:[#allocation8 + $0x50] sm:$0xff]
    %v1060 = vld [vmem:[#allocation8 + $0x58] sm:$0xff]
    %v1061 = vld [vmem:[#allocation8 + $0x60] sm:$0xff]
    %v1062 = vld [vmem:[#allocation8 + $0x68] sm:$0xff]
    %v1063 = vld [vmem:[#allocation8 + $0x70] sm:$0xff]
    %v1064 = vld [vmem:[#allocation8 + $0x78] sm:$0xff]
    %v1065 = vld [vmem:[#allocation8 + $0x80] sm:$0xff]
    %v1066 = vld [vmem:[#allocation8 + $0x88] sm:$0xff]
    %v1067 = vld [vmem:[#allocation8 + $0x90] sm:$0xff]
    %v1068 = vld [vmem:[#allocation8 + $0x98] sm:$0xff]
    %v1069 = vld [vmem:[#allocation8 + $0xa0] sm:$0xff]
    %v1070 = vld [vmem:[#allocation8 + $0xa8] sm:$0xff]
    %v1071 = vld [vmem:[#allocation8 + $0xb0] sm:$0xff]
    %v1072 = vld [vmem:[#allocation8 + $0xb8] sm:$0xff]
    %v1073 = vld [vmem:[#allocation8 + $0xc0] sm:$0xff]
    %v1074 = vld [vmem:[#allocation8 + $0xc8] sm:$0xff]
    %v1075 = vld [vmem:[#allocation8 + $0xd0] sm:$0xff]
    %v1076 = vld [vmem:[#allocation8 + $0xd8] sm:$0xff]
    %v1077 = vld [vmem:[#allocation8 + $0xe0] sm:$0xff]
    %v1078 = vld [vmem:[#allocation8 + $0xe8] sm:$0xff]
    %v1079 = vld [vmem:[#allocation8 + $0xf0] sm:$0xff]
    %v1080 = vld [vmem:[#allocation8 + $0xf8] sm:$0xff]
    %1081 = vmatprep.subr.mxu0 0.0
    %1082 = vmatpush1.msra.mxu0 %v1049
    %1083 = vmatprep.subr.mxu0 0.0
    %1084 = vmatpush1.msra.mxu0 %v1050
    %1085 = vmatprep.subr.mxu0 0.0
    %1086 = vmatpush1.msra.mxu0 %v1051
    %1087 = vmatprep.subr.mxu0 0.0
    %1088 = vmatpush1.msra.mxu0 %v1052
    %1089 = vmatprep.subr.mxu0 0.0
    %1090 = vmatpush1.msra.mxu0 %v1053
    %1091 = vmatprep.subr.mxu0 0.0
    %1092 = vmatpush1.msra.mxu0 %v1054
    %1093 = vmatprep.subr.mxu0 0.0
    %1094 = vmatpush1.msra.mxu0 %v1055
    %1095 = vmatprep.subr.mxu0 0.0
    %1096 = vmatpush1.msra.mxu0 %v1056
    %1097 = vmatprep.subr.mxu0 0.0
    %1098 = vmatpush1.msra.mxu0 %v1057
    %1099 = vmatprep.subr.mxu0 0.0
    %1100 = vmatpush1.msra.mxu0 %v1058
    %1101 = vmatprep.subr.mxu0 0.0
    %1102 = vmatpush1.msra.mxu0 %v1059
    %1103 = vmatprep.subr.mxu0 0.0
    %1104 = vmatpush1.msra.mxu0 %v1060
    %1105 = vmatprep.subr.mxu0 0.0
    %1106 = vmatpush1.msra.mxu0 %v1061
    %1107 = vmatprep.subr.mxu0 0.0
    %1108 = vmatpush1.msra.mxu0 %v1062
    %1109 = vmatprep.subr.mxu0 0.0
    %1110 = vmatpush1.msra.mxu0 %v1063
    %1111 = vmatprep.subr.mxu0 0.0
    %1112 = vmatpush1.msra.mxu0 %v1064
    %1113 = vmatprep.subr.mxu0 0.0
    %1114 = vmatpush1.msra.mxu0 %v1065
    %1115 = vmatprep.subr.mxu0 0.0
    %1116 = vmatpush1.msra.mxu0 %v1066
    %1117 = vmatprep.subr.mxu0 0.0
    %1118 = vmatpush1.msra.mxu0 %v1067
    %1119 = vmatprep.subr.mxu0 0.0
    %1120 = vmatpush1.msra.mxu0 %v1068
    %1121 = vmatprep.subr.mxu0 0.0
    %1122 = vmatpush1.msra.mxu0 %v1069
    %1123 = vmatprep.subr.mxu0 0.0
    %1124 = vmatpush1.msra.mxu0 %v1070
    %1125 = vmatprep.subr.mxu0 0.0
    %1126 = vmatpush1.msra.mxu0 %v1071
    %1127 = vmatprep.subr.mxu0 0.0
    %1128 = vmatpush1.msra.mxu0 %v1072
    %1129 = vmatprep.subr.mxu0 0.0
    %1130 = vmatpush1.msra.mxu0 %v1073
    %1131 = vmatprep.subr.mxu0 0.0
    %1132 = vmatpush1.msra.mxu0 %v1074
    %1133 = vmatprep.subr.mxu0 0.0
    %1134 = vmatpush1.msra.mxu0 %v1075
    %1135 = vmatprep.subr.mxu0 0.0
    %1136 = vmatpush1.msra.mxu0 %v1076
    %1137 = vmatprep.subr.mxu0 0.0
    %1138 = vmatpush1.msra.mxu0 %v1077
    %1139 = vmatprep.subr.mxu0 0.0
    %1140 = vmatpush1.msra.mxu0 %v1078
    %1141 = vmatprep.subr.mxu0 0.0
    %1142 = vmatpush1.msra.mxu0 %v1079
    %1143 = vmatprep.subr.mxu0 0.0
    %1144 = vmatpush1.msra.mxu0 %v1080
    %1145 = vmatprep.mubr.f32.mxu0 %v842
    %1146 = vmatmul.mubr.f32.gmra.mrb[0].mxu0 %v739
    %v1147 = vpop.f32.mrb[0].mxu0
    %v1148 = vadd.f32 0.0, %v1147
    %v1149 = vpop.f32.mrb[0].mxu0
    %1150 = vmatprep.mubr.f32.mxu0 %v1048
    %1151 = vmatmul.mubr.f32.gmra.mrb[0].mxu0 %v945
    %v1152 = vpop.f32.mrb[0].mxu0
    %v1153 = vadd.f32 0.0, %v1152
    %v1154 = vpop.f32.mrb[0].mxu0
    %1155 = vdwg.mxu0
    %1156 = vmatprep.subr.mxu0 0.0
    %1157 = vmatpush1.msra.mxu0 %v605
    %1158 = vmatprep.subr.mxu0 0.0
    %1159 = vmatpush1.msra.mxu0 %v606
    %1160 = vmatprep.subr.mxu0 0.0
    %1161 = vmatpush1.msra.mxu0 %v607
    %1162 = vmatprep.subr.mxu0 0.0
    %1163 = vmatpush1.msra.mxu0 %v608
    %1164 = vmatprep.subr.mxu0 0.0
    %1165 = vmatpush1.msra.mxu0 %v609
    %1166 = vmatprep.subr.mxu0 0.0
    %1167 = vmatpush1.msra.mxu0 %v610
    %1168 = vmatprep.subr.mxu0 0.0
    %1169 = vmatpush1.msra.mxu0 %v611
    %1170 = vmatprep.subr.mxu0 0.0
    %1171 = vmatpush1.msra.mxu0 %v612
    %1172 = vmatprep.subr.mxu0 0.0
    %1173 = vmatpush1.msra.mxu0 %v613
    %1174 = vmatprep.subr.mxu0 0.0
    %1175 = vmatpush1.msra.mxu0 %v614
    %1176 = vmatprep.subr.mxu0 0.0
    %1177 = vmatpush1.msra.mxu0 %v615
    %1178 = vmatprep.subr.mxu0 0.0
    %1179 = vmatpush1.msra.mxu0 %v616
    %1180 = vmatprep.subr.mxu0 0.0
    %1181 = vmatpush1.msra.mxu0 %v617
    %1182 = vmatprep.subr.mxu0 0.0
    %1183 = vmatpush1.msra.mxu0 %v618
    %1184 = vmatprep.subr.mxu0 0.0
    %1185 = vmatpush1.msra.mxu0 %v619
    %1186 = vmatprep.subr.mxu0 0.0
    %1187 = vmatpush1.msra.mxu0 %v620
    %1188 = vmatprep.subr.mxu0 0.0
    %1189 = vmatpush1.msra.mxu0 %v621
    %1190 = vmatprep.subr.mxu0 0.0
    %1191 = vmatpush1.msra.mxu0 %v622
    %1192 = vmatprep.subr.mxu0 0.0
    %1193 = vmatpush1.msra.mxu0 %v623
    %1194 = vmatprep.subr.mxu0 0.0
    %1195 = vmatpush1.msra.mxu0 %v624
    %1196 = vmatprep.subr.mxu0 0.0
    %1197 = vmatpush1.msra.mxu0 %v625
    %1198 = vmatprep.subr.mxu0 0.0
    %1199 = vmatpush1.msra.mxu0 %v626
    %1200 = vmatprep.subr.mxu0 0.0
    %1201 = vmatpush1.msra.mxu0 %v627
    %1202 = vmatprep.subr.mxu0 0.0
    %1203 = vmatpush1.msra.mxu0 %v628
    %1204 = vmatprep.subr.mxu0 0.0
    %1205 = vmatpush1.msra.mxu0 %v629
    %1206 = vmatprep.subr.mxu0 0.0
    %1207 = vmatpush1.msra.mxu0 %v630
    %1208 = vmatprep.subr.mxu0 0.0
    %1209 = vmatpush1.msra.mxu0 %v631
    %1210 = vmatprep.subr.mxu0 0.0
    %1211 = vmatpush1.msra.mxu0 %v632
    %1212 = vmatprep.subr.mxu0 0.0
    %1213 = vmatpush1.msra.mxu0 %v633
    %1214 = vmatprep.subr.mxu0 0.0
    %1215 = vmatpush1.msra.mxu0 %v634
    %1216 = vmatprep.subr.mxu0 0.0
    %1217 = vmatpush1.msra.mxu0 %v635
    %1218 = vmatprep.subr.mxu0 0.0
    %1219 = vmatpush1.msra.mxu0 %v636
    %1220 = vmatprep.mubr.f32.mxu0 %v396
    %1221 = vmatmul.mubr.f32.gmra.mrb[0].mxu0 %v292
    %v1222 = vpop.f32.mrb[0].mxu0
    %v1223 = vadd.f32 %v1148, %v1222
    %v1224 = vpop.f32.mrb[0].mxu0
    %1225 = vmatprep.mubr.f32.mxu0 %v604
    %1226 = vmatmul.mubr.f32.gmra.mrb[0].mxu0 %v500
    %v1227 = vpop.f32.mrb[0].mxu0
    %v1228 = vadd.f32 %v1153, %v1227
    %v1229 = vpop.f32.mrb[0].mxu0
    %1230 = vdwg.mxu0
    %v1231 = vld [vmem:[#allocation10] sm:$0xff]
    %v1232 = vld [vmem:[#allocation10 + $0x8] sm:$0xf]
    %v1234 = vsel %vm105, %v1232, 0
    %1236 = vmatprep.subr.mxu0 0.0
    %1237 = vmatpush1.msra.mxu0 %v1231
    %1238 = vmatprep.subr.mxu0 0.0
    %1239 = vmatpush1.msra.mxu0 %v1234
    %1240 = vmatprep.subr.mxu0 0.0
    %1241 = vmatpush1.msra.mxu0 0.0
    %1242 = vmatprep.subr.mxu0 0.0
    %1243 = vmatpush1.msra.mxu0 0.0
    %1244 = vmatprep.subr.mxu0 0.0
    %1245 = vmatpush1.msra.mxu0 0.0
    %1246 = vmatprep.subr.mxu0 0.0
    %1247 = vmatpush1.msra.mxu0 0.0
    %1248 = vmatprep.subr.mxu0 0.0
    %1249 = vmatpush1.msra.mxu0 0.0
    %1250 = vmatprep.subr.mxu0 0.0
    %1251 = vmatpush1.msra.mxu0 0.0
    %1252 = vmatprep.subr.mxu0 0.0
    %1253 = vmatpush1.msra.mxu0 0.0
    %1254 = vmatprep.subr.mxu0 0.0
    %1255 = vmatpush1.msra.mxu0 0.0
    %1256 = vmatprep.subr.mxu0 0.0
    %1257 = vmatpush1.msra.mxu0 0.0
    %1258 = vmatprep.subr.mxu0 0.0
    %1259 = vmatpush1.msra.mxu0 0.0
    %1260 = vmatprep.subr.mxu0 0.0
    %1261 = vmatpush1.msra.mxu0 0.0
    %1262 = vmatprep.subr.mxu0 0.0
    %1263 = vmatpush1.msra.mxu0 0.0
    %1264 = vmatprep.subr.mxu0 0.0
    %1265 = vmatpush1.msra.mxu0 0.0
    %1266 = vmatprep.subr.mxu0 0.0
    %1267 = vmatpush1.msra.mxu0 0.0
    %1268 = vmatprep.subr.mxu0 0.0
    %1269 = vmatpush1.msra.mxu0 0.0
    %1270 = vmatprep.subr.mxu0 0.0
    %1271 = vmatpush1.msra.mxu0 0.0
    %1272 = vmatprep.subr.mxu0 0.0
    %1273 = vmatpush1.msra.mxu0 0.0
    %1274 = vmatprep.subr.mxu0 0.0
    %1275 = vmatpush1.msra.mxu0 0.0
    %1276 = vmatprep.subr.mxu0 0.0
    %1277 = vmatpush1.msra.mxu0 0.0
    %1278 = vmatprep.subr.mxu0 0.0
    %1279 = vmatpush1.msra.mxu0 0.0
    %1280 = vmatprep.subr.mxu0 0.0
    %1281 = vmatpush1.msra.mxu0 0.0
    %1282 = vmatprep.subr.mxu0 0.0
    %1283 = vmatpush1.msra.mxu0 0.0
    %1284 = vmatprep.subr.mxu0 0.0
    %1285 = vmatpush1.msra.mxu0 0.0
    %1286 = vmatprep.subr.mxu0 0.0
    %1287 = vmatpush1.msra.mxu0 0.0
    %1288 = vmatprep.subr.mxu0 0.0
    %1289 = vmatpush1.msra.mxu0 0.0
    %1290 = vmatprep.subr.mxu0 0.0
    %1291 = vmatpush1.msra.mxu0 0.0
    %1292 = vmatprep.subr.mxu0 0.0
    %1293 = vmatpush1.msra.mxu0 0.0
    %1294 = vmatprep.subr.mxu0 0.0
    %1295 = vmatpush1.msra.mxu0 0.0
    %1296 = vmatprep.subr.mxu0 0.0
    %1297 = vmatpush1.msra.mxu0 0.0
    %1298 = vmatprep.subr.mxu0 0.0
    %1299 = vmatpush1.msra.mxu0 0.0
    %1300 = vmatprep.mubr.f32.mxu0 0.0
    %1301 = vmatmul.mubr.f32.gmra.mrb[0].mxu0 %v100
    %v1302 = vpop.f32.mrb[0].mxu0
    %v1303 = vadd.f32 0.0, %v1302
    %v1304 = vpop.f32.mrb[0].mxu0
    %1305 = vmatprep.mubr.f32.mxu0 0.0
    %1306 = vmatmul.mubr.f32.gmra.mrb[0].mxu0 %v103
    %v1307 = vpop.f32.mrb[0].mxu0
    %v1308 = vadd.f32 0.0, %v1307
    %v1309 = vpop.f32.mrb[0].mxu0
    %1310 = vdwg.mxu0
    %v1311 = vadd.f32 %v1223, %v1303
    %v1312 = vadd.f32 %v1228, %v1308
    %v1313 = vld [vmem:[%s5] sm:$0x1]
    %v1315 = vlaneseq
    %v1316 = vshrl.u32 %v1315, 7
    %v1317 = vsub.s32 0, %v1316
    %v1318 = vrot.slane %v1313, %v1317
    %v1320 = vadd.f32 %v1311, %v1318
    %v1321 = vadd.f32 %v1312, %v1318
    %1322 = vst [vmem:[#allocation11] sm:$0xff] %v1320
    %1323 = vst [vmem:[#allocation11 + $0x8] sm:$0xff] %v1321
    // Predicated region
    $region46: #{tpu_custom_call.1} parent=1 // pred_check
      _
    $region47: #{tpu_custom_call.1} parent=1 // pred_check_branch
      %1325 = sbr.rel (0) target = $region49
    $region48: #{tpu_custom_call.1} parent=1 // pred_region
      %s1327 = ssub.s32 256, 256
      %1328 = vsyncadd [#allocation4], %s1327
      %s1329 = sshll.u32 [#allocation11], 4
      %s1330 = int_to_ptr.vmem [resolvable:$true] %s1329
      %1335 = dma.vmem_to_hbm [thread:$0]  %s1330, 256, %s6, [#allocation4], 128, 128, 8
    $region49: #{tpu_custom_call.1} parent=1 // pred_fallthru
      _
    // Predicated region
    $region50: #{tpu_custom_call.1} parent=1 // pred_check
      _
    $region51: #{tpu_custom_call.1} parent=1 // pred_check_branch
      %1337 = sbr.rel (0) target = $region53
    $region52: #{tpu_custom_call.1} parent=1 // pred_region
      %1338 = dma.done [#allocation4], 256
    $region53: #{tpu_custom_call.1} parent=1 // pred_fallthru
      _
    %1339 = vsyncpa [#allocation3], 1
    %1340 = vsyncpa [#allocation6], 1
    %1341 = vsyncpa [#allocation9], 1
    %1342 = vsyncpa [#allocation4], 1

</llo_original>
